<compile_context>
chip_gen: v7x
topology: tpu7x:2x2x1
jax: 0.10.0
libtpu: 0.0.40
codegen_flags: <defaults>
</compile_context>

<pallas_src>
import functools

import jax
import jax.numpy as jnp
from jax import lax
from jax.experimental import pallas as pl
from jax.experimental.pallas import tpu as pltpu


def _round_up(x, m):
    return (x + m - 1) // m * m


# ----------------------------- Pallas kernel --------------------------------


def _tcn_fused_kernel(x_ref, w1_ref, b1_ref, w2_ref, b2_ref, o_ref, *,
                      K, num_levels, valid_len):
    """All TemporalBlocks fused on one (TILE_B, L_pad) tile.

    x_ref : VMEM (TILE_B, L_pad)           -- input sequence tile (channel squeezed)
    w*_ref: SMEM (num_levels*K,) f32       -- effective (weight-normed) conv taps, flat
    b*_ref: SMEM (num_levels,)   f32       -- conv biases
    o_ref : VMEM (TILE_B, L_pad)
    Invariant: columns >= valid_len of every array fed to a conv are exactly 0,
    and L_pad - valid_len >= (K-1)*2^(num_levels-1), so every pltpu.roll wraps
    in zeros == the causal left zero-padding (no per-tap masking needed).
    """
    TB, Lp = x_ref.shape
    dtype = x_ref.dtype

    # Hoisted once (JAX does not CSE broadcasted_iota): 0/1 mask of the valid
    # time range, used as a single vmul per conv to re-establish the zero tail.
    col = lax.broadcasted_iota(jnp.int32, (TB, Lp), 1)
    valid = (col < valid_len).astype(dtype)

    def causal_conv(v, w_ref, b_ref, level, dilation):
        # Conv1d(pad=(K-1)*d, dilation=d) then Chomp1d((K-1)*d):
        #   y[t] = b + sum_j w[j] * v[t - (K-1-j)*d]
        # Start from the shift-0 tap (j = K-1); rolls go to the XLU slot and the
        # scalar tap weight is fused into the multiply (no materialized temp).
        acc = w_ref[level * K + (K - 1)].astype(dtype) * v
        for j in range(K - 1):
            s = (K - 1 - j) * dilation
            acc = acc + w_ref[level * K + j].astype(dtype) * pltpu.roll(v, shift=s, axis=1)
        return acc + b_ref[level].astype(dtype)

    x = x_ref[...]
    for level in range(num_levels):
        d = 2 ** level
        # conv1 + chomp + relu (dropout1 = identity at inference); re-zero the
        # tail so conv2's rolls wrap in zeros.
        h = jnp.maximum(causal_conv(x, w1_ref, b1_ref, level, d), 0.0) * valid
        # conv2 + chomp + relu (dropout2 = identity).
        h = jnp.maximum(causal_conv(h, w2_ref, b2_ref, level, d), 0.0)
        if level < num_levels - 1:
            h = h * valid          # tail only matters if another level consumes it
        # downsample is None (1 -> 1 channels): residual is x itself.
        # relu(h + x) preserves the zero tail since both operands have zero tails.
        x = jnp.maximum(h + x, 0.0)
    o_ref[...] = x


def tcn_fused(x_pad, w1, b1, w2, b2, *, kernel_size, num_levels, valid_len,
              tile_b, vmem_limit_bytes):
    """x_pad: (B_pad, L_pad) with B_pad % tile_b == 0, L_pad % 128 == 0."""
    Bp, Lp = x_pad.shape
    max_shift = (kernel_size - 1) * (2 ** (num_levels - 1))
    assert Bp % tile_b == 0 and Lp % 128 == 0 and tile_b % 8 == 0
    # Zero-slack guard: the mask-free roll trick requires the zero tail to cover
    # the largest dilated tap shift (see kernel docstring).
    assert Lp - valid_len >= max_shift, (Lp, valid_len, max_shift)

    kern = functools.partial(_tcn_fused_kernel, K=kernel_size,
                             num_levels=num_levels, valid_len=valid_len)

    itemsize = jnp.dtype(x_pad.dtype).itemsize
    cost = pl.CostEstimate(
        flops=num_levels * (2 * (2 * kernel_size + 2) + 3) * Bp * Lp,
        transcendentals=0,
        bytes_accessed=2 * Bp * Lp * itemsize,
    )

    return pl.pallas_call(
        kern,
        out_shape=jax.ShapeDtypeStruct((Bp, Lp), x_pad.dtype),
        grid=(Bp // tile_b,),
        in_specs=[
            pl.BlockSpec((tile_b, Lp), lambda i: (i, 0)),
            pl.BlockSpec(memory_space=pltpu.MemorySpace.SMEM),
            pl.BlockSpec(memory_space=pltpu.MemorySpace.SMEM),
            pl.BlockSpec(memory_space=pltpu.MemorySpace.SMEM),
            pl.BlockSpec(memory_space=pltpu.MemorySpace.SMEM),
        ],
        out_specs=pl.BlockSpec((tile_b, Lp), lambda i: (i, 0)),
        compiler_params=pltpu.CompilerParams(
            dimension_semantics=("parallel",),
            vmem_limit_bytes=vmem_limit_bytes),
        cost_estimate=cost,
    )(x_pad, w1, b1, w2, b2)


# -------------------------- parameter construction --------------------------


def _weight_norm_effective(v, g):
    # PyTorch weight_norm (dim=0): w = g * v / ||v||, norm over all dims but dim 0.
    norm = jnp.sqrt(jnp.sum(v * v, axis=(1, 2), keepdims=True))
    return g * v / norm


def init_tcn_params(key, num_levels, kernel_size):
    """Deterministic init for the [1]*num_levels channel TCN."""
    params = []
    for _ in range(num_levels):
        key, k1, k2, k3, k4 = jax.random.split(key, 5)
        # weight_norm 'v' tensors, (out=1, in=1, K), N(0, 0.01) like init_weights.
        v1 = 0.01 * jax.random.normal(k1, (1, 1, kernel_size), dtype=jnp.float32)
        v2 = 0.01 * jax.random.normal(k2, (1, 1, kernel_size), dtype=jnp.float32)
        # g initialized to ||v|| (weight_norm's wrap-time init).
        g1 = jnp.sqrt(jnp.sum(v1 * v1, axis=(1, 2), keepdims=True))
        g2 = jnp.sqrt(jnp.sum(v2 * v2, axis=(1, 2), keepdims=True))
        # Conv1d default bias init: U(-1/sqrt(fan_in), 1/sqrt(fan_in)), fan_in = 1*K.
        bound = 1.0 / jnp.sqrt(jnp.float32(kernel_size))
        b1 = jax.random.uniform(k3, (1,), jnp.float32, -bound, bound)
        b2 = jax.random.uniform(k4, (1,), jnp.float32, -bound, bound)
        w1 = _weight_norm_effective(v1, g1)[0, 0, :]  # (K,)
        w2 = _weight_norm_effective(v2, g2)[0, 0, :]  # (K,)
        params.append({"w1": w1, "b1": b1, "w2": w2, "b2": b2})
    return params


def stack_params(params):
    """Flatten per-level params into 1-D SMEM-friendly arrays (level-major)."""
    w1 = jnp.concatenate([p["w1"] for p in params], axis=0)    # (num_levels*K,)
    w2 = jnp.concatenate([p["w2"] for p in params], axis=0)    # (num_levels*K,)
    b1 = jnp.concatenate([p["b1"] for p in params], axis=0)    # (num_levels,)
    b2 = jnp.concatenate([p["b2"] for p in params], axis=0)    # (num_levels,)
    return w1, b1, w2, b2


# ----------------------------- tiling heuristics -----------------------------


def _vmem_budget():
    """(per-block tile budget bytes, vmem_limit_bytes) sized per chip generation."""
    phys = 64 << 20                       # assume worst case (v7x: 64 MiB / TC)
    try:
        phys = int(getattr(pltpu.get_tpu_info(), "vmem_capacity_bytes", phys))
    except Exception:
        pass
    if phys >= (100 << 20):               # v5e / v6e: 128 MiB physical VMEM
        return 5 << 20, 96 << 20
    return 3 << 20, 48 << 20              # v7x (and unknown): stay well under 64 MiB


def _choose_tile_b(b_pad8, max_rows):
    """Largest multiple of 8 that divides b_pad8, fits the row budget, and (when
    b_pad8 >= 16) leaves >= 2 grid steps so both v7x TensorCores get work."""
    cap = max_rows
    if b_pad8 >= 16:
        cap = min(cap, b_pad8 // 2)
    best = 8
    t = 8
    while t <= min(cap, b_pad8):
        if b_pad8 % t == 0:
            best = t
        t += 8
    return best


# ------------------------------- TCN forward --------------------------------


def tcn_forward(text, dec_input, params, *, kernel_size,
                compute_dtype=jnp.float32):
    """Mirrors TCN.forward: dec_input (B, L, 1) -> out (B, L, 1). `text` unused.

    compute_dtype=jnp.bfloat16 is the recommended fast path on v6e / v7x (bf16
    VPU); keep float32 on v5e (no bf16 VPU) or when exact f32 math is required.
    """
    del text
    num_levels = len(params)
    # permute(0, 2, 1) -> (B, 1, L); channel dim is 1, squeeze it for the kernel.
    x = dec_input[:, :, 0].astype(compute_dtype)  # (B, L)
    B, L = x.shape

    # Lane-dense padding plus causal zero slack: time -> multiple of 128 lanes
    # AND tail >= largest dilated tap shift (so the kernel needs no wrap masks).
    max_shift = (kernel_size - 1) * (2 ** (num_levels - 1))
    L_pad = _round_up(L, 128)
    if L_pad - L < max_shift:
        L_pad = _round_up(L + max_shift, 128)

    # Tile sizing: keep each (tile_b, L_pad) block within the per-chip budget so
    # double-buffered in/out + ~6 live full-tile temporaries fit VMEM; never pad
    # batch beyond the next multiple of 8 (padded rows are wasted VALU work).
    tile_budget, vmem_limit = _vmem_budget()
    row_bytes = L_pad * jnp.dtype(compute_dtype).itemsize
    max_rows = max(8, (tile_budget // row_bytes) // 8 * 8)
    B_pad = _round_up(B, 8)
    tile_b = _choose_tile_b(B_pad, max_rows)

    x_p = jnp.pad(x, ((0, B_pad - B), (0, L_pad - L)))
    w1, b1, w2, b2 = stack_params(params)

    out_p = tcn_fused(x_p, w1, b1, w2, b2,
                      kernel_size=kernel_size, num_levels=num_levels,
                      valid_len=L, tile_b=tile_b, vmem_limit_bytes=vmem_limit)
    # Slice off padding and permute back to (B, L, 1).
    return out_p[:B, :L][:, :, None].astype(dec_input.dtype)


# pure-JAX reference (same math, no Pallas) for a sanity check
def _tcn_reference(dec_input, params, *, kernel_size):
    x = dec_input[:, :, 0].astype(jnp.float32)
    B, L = x.shape
    for i, p in enumerate(params):
        d = 2 ** i

        def shift(v, s):
            if s == 0:
                return v
            if s >= L:
                return jnp.zeros((B, L), v.dtype)
            return jnp.concatenate([jnp.zeros((B, s), v.dtype), v[:, : L - s]], axis=1)

        def conv(v, w, b):
            acc = jnp.full((B, L), b[0], jnp.float32)
            for j in range(kernel_size):
                acc = acc + w[j] * shift(v, (kernel_size - 1 - j) * d)
            return acc

        h = jnp.maximum(conv(x, p["w1"], p["b1"]), 0.0)
        h = jnp.maximum(conv(h, p["w2"], p["b2"]), 0.0)
        x = jnp.maximum(h + x, 0.0)
    return x[:, :, None]


# ---------------------------------- main -------------------------------------


if __name__ == "__main__":
    class Config:
        layer = 3      # num_channels = [1] * layer
        kernel = 3     # kernel_size
        dropout = 0.2  # identity at inference

    config = Config()

    key = jax.random.PRNGKey(0)
    key, kp, kd, kt = jax.random.split(key, 4)

    params = init_tcn_params(kp, config.layer, config.kernel)

    B, L = 2, 16
    dec_input = jax.random.normal(kd, (B, L, 1), dtype=jnp.float32)
    text = jax.random.normal(kt, (B, 8), dtype=jnp.float32)  # unused by forward

    ref = _tcn_reference(dec_input, params, kernel_size=config.kernel)

    # float32 path (exact vs reference).
    out = tcn_forward(text, dec_input, params, kernel_size=config.kernel)
    out = jax.block_until_ready(out)
    assert out.shape == (B, L, 1)
    assert jnp.allclose(out, ref, atol=1e-5, rtol=1e-5), "Pallas TCN mismatch vs reference"

    # bf16 fast path on chips with a bf16 VPU (v6e / v7x); skipped on v5e/older.
    dk = jax.devices()[0].device_kind.lower()
    if ("v6" in dk) or ("v7" in dk):
        out_bf16 = tcn_forward(text, dec_input, params,
                               kernel_size=config.kernel,
                               compute_dtype=jnp.bfloat16)
        out_bf16 = jax.block_until_ready(out_bf16)
        assert out_bf16.shape == (B, L, 1)
        assert jnp.allclose(out_bf16.astype(jnp.float32), ref, atol=5e-2, rtol=5e-2), \
            "Pallas TCN bf16 path mismatch vs reference"

    print("KERNEL_OK")
</pallas_src>

<mosaic_0001>
module attributes {stable_mosaic.version = 11 : i64} {
  func.func @_tcn_fused_kernel(%arg0: i32, %arg1: memref<8x128xf32, #tpu.memory_space<vmem>>, %arg2: memref<9xf32, #tpu.memory_space<smem>>, %arg3: memref<3xf32, #tpu.memory_space<smem>>, %arg4: memref<9xf32, #tpu.memory_space<smem>>, %arg5: memref<3xf32, #tpu.memory_space<smem>>, %arg6: memref<8x128xf32, #tpu.memory_space<vmem>>) attributes {dimension_semantics = [#tpu.dimension_semantics<parallel>], iteration_bounds = array<i64: 1>, scalar_prefetch = 0 : i64, scratch_operands = 0 : i64, tpu.core_type = #tpu.core_type<tc>, window_params = [{transform_indices = @transform_0, window_bounds = array<i64: 8, 128>}, {transform_indices = @transform_1, window_bounds = array<i64: 9>}, {transform_indices = @transform_2, window_bounds = array<i64: 3>}, {transform_indices = @transform_3, window_bounds = array<i64: 9>}, {transform_indices = @transform_4, window_bounds = array<i64: 3>}, {transform_indices = @transform_5, window_bounds = array<i64: 8, 128>}]} {
    %0 = tpu.iota {dimensions = array<i32: 1>} : vector<8x128xi32>
    %c16_i32 = arith.constant 16 : i32
    %1 = vector.broadcast %c16_i32 : i32 to vector<8x128xi32>
    %2 = arith.cmpi slt, %0, %1 : vector<8x128xi32>
    %3 = arith.extui %2 : vector<8x128xi1> to vector<8x128xi32>
    %4 = arith.sitofp %3 : vector<8x128xi32> to vector<8x128xf32>
    %c0 = arith.constant 0 : index
    %c0_0 = arith.constant 0 : index
    %5 = vector.load %arg1[%c0, %c0_0] : memref<8x128xf32, #tpu.memory_space<vmem>>, vector<8x128xf32>
    %c2 = arith.constant 2 : index
    %6 = memref.load %arg2[%c2] : memref<9xf32, #tpu.memory_space<smem>>
    %7 = vector.broadcast %6 : f32 to vector<8x128xf32>
    %8 = arith.mulf %7, %5 : vector<8x128xf32>
    %c0_1 = arith.constant 0 : index
    %9 = memref.load %arg2[%c0_1] : memref<9xf32, #tpu.memory_space<smem>>
    %c2_i32 = arith.constant 2 : i32
    %10 = tpu.dynamic_rotate %5 by %c2_i32 dim 1 : vector<8x128xf32>, i32 -> vector<8x128xf32>
    %11 = vector.broadcast %9 : f32 to vector<8x128xf32>
    %12 = arith.mulf %11, %10 : vector<8x128xf32>
    %13 = arith.addf %8, %12 : vector<8x128xf32>
    %c1 = arith.constant 1 : index
    %14 = memref.load %arg2[%c1] : memref<9xf32, #tpu.memory_space<smem>>
    %c1_i32 = arith.constant 1 : i32
    %15 = tpu.dynamic_rotate %5 by %c1_i32 dim 1 : vector<8x128xf32>, i32 -> vector<8x128xf32>
    %16 = vector.broadcast %14 : f32 to vector<8x128xf32>
    %17 = arith.mulf %16, %15 : vector<8x128xf32>
    %18 = arith.addf %13, %17 : vector<8x128xf32>
    %c0_2 = arith.constant 0 : index
    %19 = memref.load %arg3[%c0_2] : memref<3xf32, #tpu.memory_space<smem>>
    %20 = vector.broadcast %19 : f32 to vector<8x128xf32>
    %21 = arith.addf %18, %20 : vector<8x128xf32>
    %cst = arith.constant 0.000000e+00 : f32
    %22 = vector.broadcast %cst : f32 to vector<8x128xf32>
    %23 = arith.maximumf %21, %22 : vector<8x128xf32>
    %24 = arith.mulf %23, %4 : vector<8x128xf32>
    %c2_3 = arith.constant 2 : index
    %25 = memref.load %arg4[%c2_3] : memref<9xf32, #tpu.memory_space<smem>>
    %26 = vector.broadcast %25 : f32 to vector<8x128xf32>
    %27 = arith.mulf %26, %24 : vector<8x128xf32>
    %c0_4 = arith.constant 0 : index
    %28 = memref.load %arg4[%c0_4] : memref<9xf32, #tpu.memory_space<smem>>
    %c2_i32_5 = arith.constant 2 : i32
    %29 = tpu.dynamic_rotate %24 by %c2_i32_5 dim 1 : vector<8x128xf32>, i32 -> vector<8x128xf32>
    %30 = vector.broadcast %28 : f32 to vector<8x128xf32>
    %31 = arith.mulf %30, %29 : vector<8x128xf32>
    %32 = arith.addf %27, %31 : vector<8x128xf32>
    %c1_6 = arith.constant 1 : index
    %33 = memref.load %arg4[%c1_6] : memref<9xf32, #tpu.memory_space<smem>>
    %c1_i32_7 = arith.constant 1 : i32
    %34 = tpu.dynamic_rotate %24 by %c1_i32_7 dim 1 : vector<8x128xf32>, i32 -> vector<8x128xf32>
    %35 = vector.broadcast %33 : f32 to vector<8x128xf32>
    %36 = arith.mulf %35, %34 : vector<8x128xf32>
    %37 = arith.addf %32, %36 : vector<8x128xf32>
    %c0_8 = arith.constant 0 : index
    %38 = memref.load %arg5[%c0_8] : memref<3xf32, #tpu.memory_space<smem>>
    %39 = vector.broadcast %38 : f32 to vector<8x128xf32>
    %40 = arith.addf %37, %39 : vector<8x128xf32>
    %cst_9 = arith.constant 0.000000e+00 : f32
    %41 = vector.broadcast %cst_9 : f32 to vector<8x128xf32>
    %42 = arith.maximumf %40, %41 : vector<8x128xf32>
    %43 = arith.mulf %42, %4 : vector<8x128xf32>
    %44 = arith.addf %43, %5 : vector<8x128xf32>
    %cst_10 = arith.constant 0.000000e+00 : f32
    %45 = vector.broadcast %cst_10 : f32 to vector<8x128xf32>
    %46 = arith.maximumf %44, %45 : vector<8x128xf32>
    %c5 = arith.constant 5 : index
    %47 = memref.load %arg2[%c5] : memref<9xf32, #tpu.memory_space<smem>>
    %48 = vector.broadcast %47 : f32 to vector<8x128xf32>
    %49 = arith.mulf %48, %46 : vector<8x128xf32>
    %c3 = arith.constant 3 : index
    %50 = memref.load %arg2[%c3] : memref<9xf32, #tpu.memory_space<smem>>
    %c4_i32 = arith.constant 4 : i32
    %51 = tpu.dynamic_rotate %46 by %c4_i32 dim 1 : vector<8x128xf32>, i32 -> vector<8x128xf32>
    %52 = vector.broadcast %50 : f32 to vector<8x128xf32>
    %53 = arith.mulf %52, %51 : vector<8x128xf32>
    %54 = arith.addf %49, %53 : vector<8x128xf32>
    %c4 = arith.constant 4 : index
    %55 = memref.load %arg2[%c4] : memref<9xf32, #tpu.memory_space<smem>>
    %c2_i32_11 = arith.constant 2 : i32
    %56 = tpu.dynamic_rotate %46 by %c2_i32_11 dim 1 : vector<8x128xf32>, i32 -> vector<8x128xf32>
    %57 = vector.broadcast %55 : f32 to vector<8x128xf32>
    %58 = arith.mulf %57, %56 : vector<8x128xf32>
    %59 = arith.addf %54, %58 : vector<8x128xf32>
    %c1_12 = arith.constant 1 : index
    %60 = memref.load %arg3[%c1_12] : memref<3xf32, #tpu.memory_space<smem>>
    %61 = vector.broadcast %60 : f32 to vector<8x128xf32>
    %62 = arith.addf %59, %61 : vector<8x128xf32>
    %cst_13 = arith.constant 0.000000e+00 : f32
    %63 = vector.broadcast %cst_13 : f32 to vector<8x128xf32>
    %64 = arith.maximumf %62, %63 : vector<8x128xf32>
    %65 = arith.mulf %64, %4 : vector<8x128xf32>
    %c5_14 = arith.constant 5 : index
    %66 = memref.load %arg4[%c5_14] : memref<9xf32, #tpu.memory_space<smem>>
    %67 = vector.broadcast %66 : f32 to vector<8x128xf32>
    %68 = arith.mulf %67, %65 : vector<8x128xf32>
    %c3_15 = arith.constant 3 : index
    %69 = memref.load %arg4[%c3_15] : memref<9xf32, #tpu.memory_space<smem>>
    %c4_i32_16 = arith.constant 4 : i32
    %70 = tpu.dynamic_rotate %65 by %c4_i32_16 dim 1 : vector<8x128xf32>, i32 -> vector<8x128xf32>
    %71 = vector.broadcast %69 : f32 to vector<8x128xf32>
    %72 = arith.mulf %71, %70 : vector<8x128xf32>
    %73 = arith.addf %68, %72 : vector<8x128xf32>
    %c4_17 = arith.constant 4 : index
    %74 = memref.load %arg4[%c4_17] : memref<9xf32, #tpu.memory_space<smem>>
    %c2_i32_18 = arith.constant 2 : i32
    %75 = tpu.dynamic_rotate %65 by %c2_i32_18 dim 1 : vector<8x128xf32>, i32 -> vector<8x128xf32>
    %76 = vector.broadcast %74 : f32 to vector<8x128xf32>
    %77 = arith.mulf %76, %75 : vector<8x128xf32>
    %78 = arith.addf %73, %77 : vector<8x128xf32>
    %c1_19 = arith.constant 1 : index
    %79 = memref.load %arg5[%c1_19] : memref<3xf32, #tpu.memory_space<smem>>
    %80 = vector.broadcast %79 : f32 to vector<8x128xf32>
    %81 = arith.addf %78, %80 : vector<8x128xf32>
    %cst_20 = arith.constant 0.000000e+00 : f32
    %82 = vector.broadcast %cst_20 : f32 to vector<8x128xf32>
    %83 = arith.maximumf %81, %82 : vector<8x128xf32>
    %84 = arith.mulf %83, %4 : vector<8x128xf32>
    %85 = arith.addf %84, %46 : vector<8x128xf32>
    %cst_21 = arith.constant 0.000000e+00 : f32
    %86 = vector.broadcast %cst_21 : f32 to vector<8x128xf32>
    %87 = arith.maximumf %85, %86 : vector<8x128xf32>
    %c8 = arith.constant 8 : index
    %88 = memref.load %arg2[%c8] : memref<9xf32, #tpu.memory_space<smem>>
    %89 = vector.broadcast %88 : f32 to vector<8x128xf32>
    %90 = arith.mulf %89, %87 : vector<8x128xf32>
    %c6 = arith.constant 6 : index
    %91 = memref.load %arg2[%c6] : memref<9xf32, #tpu.memory_space<smem>>
    %c8_i32 = arith.constant 8 : i32
    %92 = tpu.dynamic_rotate %87 by %c8_i32 dim 1 : vector<8x128xf32>, i32 -> vector<8x128xf32>
    %93 = vector.broadcast %91 : f32 to vector<8x128xf32>
    %94 = arith.mulf %93, %92 : vector<8x128xf32>
    %95 = arith.addf %90, %94 : vector<8x128xf32>
    %c7 = arith.constant 7 : index
    %96 = memref.load %arg2[%c7] : memref<9xf32, #tpu.memory_space<smem>>
    %c4_i32_22 = arith.constant 4 : i32
    %97 = tpu.dynamic_rotate %87 by %c4_i32_22 dim 1 : vector<8x128xf32>, i32 -> vector<8x128xf32>
    %98 = vector.broadcast %96 : f32 to vector<8x128xf32>
    %99 = arith.mulf %98, %97 : vector<8x128xf32>
    %100 = arith.addf %95, %99 : vector<8x128xf32>
    %c2_23 = arith.constant 2 : index
    %101 = memref.load %arg3[%c2_23] : memref<3xf32, #tpu.memory_space<smem>>
    %102 = vector.broadcast %101 : f32 to vector<8x128xf32>
    %103 = arith.addf %100, %102 : vector<8x128xf32>
    %cst_24 = arith.constant 0.000000e+00 : f32
    %104 = vector.broadcast %cst_24 : f32 to vector<8x128xf32>
    %105 = arith.maximumf %103, %104 : vector<8x128xf32>
    %106 = arith.mulf %105, %4 : vector<8x128xf32>
    %c8_25 = arith.constant 8 : index
    %107 = memref.load %arg4[%c8_25] : memref<9xf32, #tpu.memory_space<smem>>
    %108 = vector.broadcast %107 : f32 to vector<8x128xf32>
    %109 = arith.mulf %108, %106 : vector<8x128xf32>
    %c6_26 = arith.constant 6 : index
    %110 = memref.load %arg4[%c6_26] : memref<9xf32, #tpu.memory_space<smem>>
    %c8_i32_27 = arith.constant 8 : i32
    %111 = tpu.dynamic_rotate %106 by %c8_i32_27 dim 1 : vector<8x128xf32>, i32 -> vector<8x128xf32>
    %112 = vector.broadcast %110 : f32 to vector<8x128xf32>
    %113 = arith.mulf %112, %111 : vector<8x128xf32>
    %114 = arith.addf %109, %113 : vector<8x128xf32>
    %c7_28 = arith.constant 7 : index
    %115 = memref.load %arg4[%c7_28] : memref<9xf32, #tpu.memory_space<smem>>
    %c4_i32_29 = arith.constant 4 : i32
    %116 = tpu.dynamic_rotate %106 by %c4_i32_29 dim 1 : vector<8x128xf32>, i32 -> vector<8x128xf32>
    %117 = vector.broadcast %115 : f32 to vector<8x128xf32>
    %118 = arith.mulf %117, %116 : vector<8x128xf32>
    %119 = arith.addf %114, %118 : vector<8x128xf32>
    %c2_30 = arith.constant 2 : index
    %120 = memref.load %arg5[%c2_30] : memref<3xf32, #tpu.memory_space<smem>>
    %121 = vector.broadcast %120 : f32 to vector<8x128xf32>
    %122 = arith.addf %119, %121 : vector<8x128xf32>
    %cst_31 = arith.constant 0.000000e+00 : f32
    %123 = vector.broadcast %cst_31 : f32 to vector<8x128xf32>
    %124 = arith.maximumf %122, %123 : vector<8x128xf32>
    %125 = arith.addf %124, %87 : vector<8x128xf32>
    %cst_32 = arith.constant 0.000000e+00 : f32
    %126 = vector.broadcast %cst_32 : f32 to vector<8x128xf32>
    %127 = arith.maximumf %125, %126 : vector<8x128xf32>
    %c0_33 = arith.constant 0 : index
    %c0_34 = arith.constant 0 : index
    %128 = vector.load %arg6[%c0_33, %c0_34] : memref<8x128xf32, #tpu.memory_space<vmem>>, vector<8x128xf32>
    tpu.vector_store %arg6[%c0_33, %c0_34], %127 {strides = array<i32>} : memref<8x128xf32, #tpu.memory_space<vmem>>, vector<8x128xf32>,
    return
  }
  func.func @transform_0(%arg0: i32) -> (i32, i32) {
    %c0_i32 = arith.constant 0 : i32
    %c0_i32_0 = arith.constant 0 : i32
    return %arg0, %c0_i32 : i32, i32
  }
  func.func @transform_1(%arg0: i32) -> i32 {
    %c0_i32 = arith.constant 0 : i32
    %c0_i32_0 = arith.constant 0 : i32
    return %c0_i32 : i32
  }
  func.func @transform_2(%arg0: i32) -> i32 {
    %c0_i32 = arith.constant 0 : i32
    %c0_i32_0 = arith.constant 0 : i32
    return %c0_i32 : i32
  }
  func.func @transform_3(%arg0: i32) -> i32 {
    %c0_i32 = arith.constant 0 : i32
    %c0_i32_0 = arith.constant 0 : i32
    return %c0_i32 : i32
  }
  func.func @transform_4(%arg0: i32) -> i32 {
    %c0_i32 = arith.constant 0 : i32
    %c0_i32_0 = arith.constant 0 : i32
    return %c0_i32 : i32
  }
  func.func @transform_5(%arg0: i32) -> (i32, i32) {
    %c0_i32 = arith.constant 0 : i32
    %c0_i32_0 = arith.constant 0 : i32
    return %arg0, %c0_i32 : i32, i32
  }
}

</mosaic_0001>

<llo_original>
// kernel: tpu_custom_call.1
$region0: #{tpu_custom_call.1}
  #allocation0 [shape = 'u32[]', space=smem, size = 0x4, offset = 0x4, fixed_abs, tag = 'smem constant byte address 0x4 - core index']
  #allocation1 [shape = 'u32[144,128]{1,0:T(1,128)}', space=vmem, size = 0x12000, scoped, tag = 'internal scratch']
  %s0 = inlined_call_operand.hbm [shape: f32[8,128], index: 0, kind: input, shape index: {}]
  %s1 = inlined_call_operand.vmem [shape: f32[9], index: 1, kind: input, shape index: {}]
  %s2 = inlined_call_operand.vmem [shape: f32[3], index: 2, kind: input, shape index: {}]
  %s3 = inlined_call_operand.vmem [shape: f32[9], index: 3, kind: input, shape index: {}]
  %s4 = inlined_call_operand.vmem [shape: f32[3], index: 4, kind: input, shape index: {}]
  %s5 = inlined_call_operand.hbm [shape: f32[8,128], index: 5, kind: output, shape index: {}]
  %s6 = sld [smem:[#allocation0]]
  $region50: #{tpu_custom_call.1} parent=0
    _
  %s8 = ssub.s32 1, %s6
  %s9 = scalar_select 0, %s8, %s6
  $region1: #{tpu_custom_call.1} parent=0
    #allocation2 [shape = 'u8[4096]{0}', space=vmem, size = 0x1000, scoped, tag = 'input window, operand 0, single buffered']
    #allocation3 [shape = 's32[1]{0}', space=sflag, size = 0x4, scoped, tag = 'scoped memory for tpu_custom_call.1']
    #allocation4 [shape = 's32[1]{0}', space=sflag, size = 0x4, scoped, tag = 'scoped memory for tpu_custom_call.1']
    #allocation5 [shape = 's32[1]{0}', space=sflag, size = 0x4, scoped, tag = 'scoped memory for tpu_custom_call.1']
    #allocation6 [shape = 'u8[512]{0}', space=smem, size = 0x200, scoped, tag = 'input window, operand 1, single buffered']
    #allocation7 [shape = 'u8[512]{0}', space=smem, size = 0x200, scoped, tag = 'input window, operand 2, single buffered']
    #allocation8 [shape = 's32[1]{0}', space=sflag, size = 0x4, scoped, tag = 'scoped memory for tpu_custom_call.1']
    #allocation9 [shape = 'u8[512]{0}', space=smem, size = 0x200, scoped, tag = 'input window, operand 3, single buffered']
    #allocation10 [shape = 'u8[512]{0}', space=smem, size = 0x200, scoped, tag = 'input window, operand 4, single buffered']
    #allocation11 [shape = 's32[1]{0}', space=sflag, size = 0x4, scoped, tag = 'scoped memory for tpu_custom_call.1']
    #allocation12 [shape = 'u8[4096]{0}', space=vmem, size = 0x1000, scoped, tag = 'output window, operand 0, single buffered']
    %10 = vsyncpa [#allocation3], 0
    %11 = vsyncpa [#allocation5], 0
    %12 = vsyncpa [#allocation8], 0
    %13 = vsyncpa [#allocation11], 0
    %14 = vsyncpa [#allocation4], 0
    // Predicated region
    $region2: #{tpu_custom_call.1} parent=1 // pred_check
      _
    $region3: #{tpu_custom_call.1} parent=1 // pred_check_branch
      %16 = sbr.rel (0) target = $region5
    $region4: #{tpu_custom_call.1} parent=1 // pred_region
      %s18 = ssub.s32 128, 128
      %19 = vsyncadd [#allocation3], %s18
      %s21 = sshll.u32 [#allocation2], 4
      %s22 = int_to_ptr.vmem [resolvable:$true] %s21
      %24 = dma.hbm_to_vmem [thread:$0]  %s0, 128, %s22, [#allocation3]
    $region5: #{tpu_custom_call.1} parent=1 // pred_fallthru
      _
    // Predicated region
    $region6: #{tpu_custom_call.1} parent=1 // pred_check
      _
    $region7: #{tpu_custom_call.1} parent=1 // pred_check_branch
      %26 = sbr.rel (0) target = $region9
    $region8: #{tpu_custom_call.1} parent=1 // pred_region
      %s28 = ssub.s32 16, 16
      %29 = vsyncadd [#allocation5], %s28
      %s31 = sshll.u32 %s1, 4
      %s32 = int_to_ptr.vmem [resolvable:$true] %s31
      %34 = dma.vmem_to_smem %s32, 16, [#allocation6], [#allocation5]
    $region9: #{tpu_custom_call.1} parent=1 // pred_fallthru
      _
    // Predicated region
    $region10: #{tpu_custom_call.1} parent=1 // pred_check
      _
    $region11: #{tpu_custom_call.1} parent=1 // pred_check_branch
      %36 = sbr.rel (0) target = $region13
    $region12: #{tpu_custom_call.1} parent=1 // pred_region
      %s38 = ssub.s32 16, 16
      %39 = vsyncadd [#allocation8], %s38
      %s41 = sshll.u32 %s2, 4
      %s42 = int_to_ptr.vmem [resolvable:$true] %s41
      %44 = dma.vmem_to_smem %s42, 16, [#allocation7], [#allocation8]
    $region13: #{tpu_custom_call.1} parent=1 // pred_fallthru
      _
    // Predicated region
    $region14: #{tpu_custom_call.1} parent=1 // pred_check
      _
    $region15: #{tpu_custom_call.1} parent=1 // pred_check_branch
      %46 = sbr.rel (0) target = $region17
    $region16: #{tpu_custom_call.1} parent=1 // pred_region
      %s48 = ssub.s32 16, 16
      %49 = vsyncadd [#allocation8], %s48
      %s51 = sshll.u32 %s3, 4
      %s52 = int_to_ptr.vmem [resolvable:$true] %s51
      %54 = dma.vmem_to_smem %s52, 16, [#allocation9], [#allocation8]
    $region17: #{tpu_custom_call.1} parent=1 // pred_fallthru
      _
    // Predicated region
    $region18: #{tpu_custom_call.1} parent=1 // pred_check
      _
    $region19: #{tpu_custom_call.1} parent=1 // pred_check_branch
      %56 = sbr.rel (0) target = $region21
    $region20: #{tpu_custom_call.1} parent=1 // pred_region
      %s58 = ssub.s32 16, 16
      %59 = vsyncadd [#allocation11], %s58
      %s61 = sshll.u32 %s4, 4
      %s62 = int_to_ptr.vmem [resolvable:$true] %s61
      %64 = dma.vmem_to_smem %s62, 16, [#allocation10], [#allocation11]
    $region21: #{tpu_custom_call.1} parent=1 // pred_fallthru
      _
    // Predicated region
    $region22: #{tpu_custom_call.1} parent=1 // pred_check
      _
    $region23: #{tpu_custom_call.1} parent=1 // pred_check_branch
      %66 = sbr.rel (0) target = $region25
    $region24: #{tpu_custom_call.1} parent=1 // pred_region
      %67 = dma.done [#allocation3], 128
    $region25: #{tpu_custom_call.1} parent=1 // pred_fallthru
      _
    // Predicated region
    $region26: #{tpu_custom_call.1} parent=1 // pred_check
      _
    $region27: #{tpu_custom_call.1} parent=1 // pred_check_branch
      %69 = sbr.rel (0) target = $region29
    $region28: #{tpu_custom_call.1} parent=1 // pred_region
      %70 = dma.done [#allocation5], 16
    $region29: #{tpu_custom_call.1} parent=1 // pred_fallthru
      _
    // Predicated region
    $region30: #{tpu_custom_call.1} parent=1 // pred_check
      _
    $region31: #{tpu_custom_call.1} parent=1 // pred_check_branch
      %72 = sbr.rel (0) target = $region33
    $region32: #{tpu_custom_call.1} parent=1 // pred_region
      %73 = dma.done [#allocation8], 16
    $region33: #{tpu_custom_call.1} parent=1 // pred_fallthru
      _
    // Predicated region
    $region34: #{tpu_custom_call.1} parent=1 // pred_check
      _
    $region35: #{tpu_custom_call.1} parent=1 // pred_check_branch
      %75 = sbr.rel (0) target = $region37
    $region36: #{tpu_custom_call.1} parent=1 // pred_region
      %76 = dma.done [#allocation8], 16
    $region37: #{tpu_custom_call.1} parent=1 // pred_fallthru
      _
    // Predicated region
    $region38: #{tpu_custom_call.1} parent=1 // pred_check
      _
    $region39: #{tpu_custom_call.1} parent=1 // pred_check_branch
      %78 = sbr.rel (0) target = $region41
    $region40: #{tpu_custom_call.1} parent=1 // pred_region
      %79 = dma.done [#allocation11], 16
    $region41: #{tpu_custom_call.1} parent=1 // pred_fallthru
      _
    %80 = sfence
    %v81 = vlaneseq
    %v82 = vand.u32 %v81, 127
    %vm83 = vcmp.lt.s32.totalorder %v82, 16
    %v84 = vsel %vm83, 1, 0
    %v85 = vcvt.s32.f32 %v84
    %v86 = vld [vmem:[#allocation2] sm:$0xff]
    %s87 = sld [smem:[#allocation6 + $0x2]]
    %v88 = vstv %s87
    %v89 = vmul.f32 %v88, %v86
    %s90 = sld [smem:[#allocation6]]
    %91 = vrot.lane.b32.xlu0 %v86, 2
    %v92 = vpop.permute.xlu0 %91
    %v93 = vstv %s90
    %v94 = vmul.f32 %v93, %v92
    %v95 = vadd.f32 %v89, %v94
    %s96 = sld [smem:[#allocation6 + $0x1]]
    %97 = vrot.lane.b32.xlu0 %v86, 1
    %v98 = vpop.permute.xlu0 %97
    %v99 = vstv %s96
    %v100 = vmul.f32 %v99, %v98
    %v101 = vadd.f32 %v95, %v100
    %s102 = sld [smem:[#allocation7]]
    %v103 = vstv %s102
    %v104 = vadd.f32 %v101, %v103
    %v105 = vmax.f32 %v104, 0.0
    %v106 = vmul.f32 %v105, %v85
    %s107 = sld [smem:[#allocation9 + $0x2]]
    %v108 = vstv %s107
    %v109 = vmul.f32 %v108, %v106
    %s110 = sld [smem:[#allocation9]]
    %111 = vrot.lane.b32.xlu0 %v106, 2
    %v112 = vpop.permute.xlu0 %111
    %v113 = vstv %s110
    %v114 = vmul.f32 %v113, %v112
    %v115 = vadd.f32 %v109, %v114
    %s116 = sld [smem:[#allocation9 + $0x1]]
    %117 = vrot.lane.b32.xlu0 %v106, 1
    %v118 = vpop.permute.xlu0 %117
    %v119 = vstv %s116
    %v120 = vmul.f32 %v119, %v118
    %v121 = vadd.f32 %v115, %v120
    %s122 = sld [smem:[#allocation10]]
    %v123 = vstv %s122
    %v124 = vadd.f32 %v121, %v123
    %v125 = vmax.f32 %v124, 0.0
    %v126 = vmul.f32 %v125, %v85
    %v127 = vadd.f32 %v126, %v86
    %v128 = vmax.f32 %v127, 0.0
    %s129 = sld [smem:[#allocation6 + $0x5]]
    %v130 = vstv %s129
    %v131 = vmul.f32 %v130, %v128
    %s132 = sld [smem:[#allocation6 + $0x3]]
    %133 = vrot.lane.b32.xlu0 %v128, 4
    %v134 = vpop.permute.xlu0 %133
    %v135 = vstv %s132
    %v136 = vmul.f32 %v135, %v134
    %v137 = vadd.f32 %v131, %v136
    %s138 = sld [smem:[#allocation6 + $0x4]]
    %139 = vrot.lane.b32.xlu0 %v128, 2
    %v140 = vpop.permute.xlu0 %139
    %v141 = vstv %s138
    %v142 = vmul.f32 %v141, %v140
    %v143 = vadd.f32 %v137, %v142
    %s144 = sld [smem:[#allocation7 + $0x1]]
    %v145 = vstv %s144
    %v146 = vadd.f32 %v143, %v145
    %v147 = vmax.f32 %v146, 0.0
    %v148 = vmul.f32 %v147, %v85
    %s149 = sld [smem:[#allocation9 + $0x5]]
    %v150 = vstv %s149
    %v151 = vmul.f32 %v150, %v148
    %s152 = sld [smem:[#allocation9 + $0x3]]
    %153 = vrot.lane.b32.xlu0 %v148, 4
    %v154 = vpop.permute.xlu0 %153
    %v155 = vstv %s152
    %v156 = vmul.f32 %v155, %v154
    %v157 = vadd.f32 %v151, %v156
    %s158 = sld [smem:[#allocation9 + $0x4]]
    %159 = vrot.lane.b32.xlu0 %v148, 2
    %v160 = vpop.permute.xlu0 %159
    %v161 = vstv %s158
    %v162 = vmul.f32 %v161, %v160
    %v163 = vadd.f32 %v157, %v162
    %s164 = sld [smem:[#allocation10 + $0x1]]
    %v165 = vstv %s164
    %v166 = vadd.f32 %v163, %v165
    %v167 = vmax.f32 %v166, 0.0
    %v168 = vmul.f32 %v167, %v85
    %v169 = vadd.f32 %v168, %v128
    %v170 = vmax.f32 %v169, 0.0
    %s171 = sld [smem:[#allocation6 + $0x8]]
    %v172 = vstv %s171
    %v173 = vmul.f32 %v172, %v170
    %s174 = sld [smem:[#allocation6 + $0x6]]
    %175 = vrot.lane.b32.xlu0 %v170, 8
    %v176 = vpop.permute.xlu0 %175
    %v177 = vstv %s174
    %v178 = vmul.f32 %v177, %v176
    %v179 = vadd.f32 %v173, %v178
    %s180 = sld [smem:[#allocation6 + $0x7]]
    %181 = vrot.lane.b32.xlu0 %v170, 4
    %v182 = vpop.permute.xlu0 %181
    %v183 = vstv %s180
    %v184 = vmul.f32 %v183, %v182
    %v185 = vadd.f32 %v179, %v184
    %s186 = sld [smem:[#allocation7 + $0x2]]
    %v187 = vstv %s186
    %v188 = vadd.f32 %v185, %v187
    %v189 = vmax.f32 %v188, 0.0
    %v190 = vmul.f32 %v189, %v85
    %s191 = sld [smem:[#allocation9 + $0x8]]
    %v192 = vstv %s191
    %v193 = vmul.f32 %v192, %v190
    %s194 = sld [smem:[#allocation9 + $0x6]]
    %195 = vrot.lane.b32.xlu0 %v190, 8
    %v196 = vpop.permute.xlu0 %195
    %v197 = vstv %s194
    %v198 = vmul.f32 %v197, %v196
    %v199 = vadd.f32 %v193, %v198
    %s200 = sld [smem:[#allocation9 + $0x7]]
    %201 = vrot.lane.b32.xlu0 %v190, 4
    %v202 = vpop.permute.xlu0 %201
    %v203 = vstv %s200
    %v204 = vmul.f32 %v203, %v202
    %v205 = vadd.f32 %v199, %v204
    %s206 = sld [smem:[#allocation10 + $0x2]]
    %v207 = vstv %s206
    %v208 = vadd.f32 %v205, %v207
    %v209 = vmax.f32 %v208, 0.0
    %v210 = vadd.f32 %v209, %v170
    %v211 = vmax.f32 %v210, 0.0
    %212 = vst [vmem:[#allocation12] sm:$0xff] %v211
    // Predicated region
    $region42: #{tpu_custom_call.1} parent=1 // pred_check
      _
    $region43: #{tpu_custom_call.1} parent=1 // pred_check_branch
      %214 = sbr.rel (0) target = $region45
    $region44: #{tpu_custom_call.1} parent=1 // pred_region
      %s216 = ssub.s32 128, 128
      %217 = vsyncadd [#allocation4], %s216
      %s219 = sshll.u32 [#allocation12], 4
      %s220 = int_to_ptr.vmem [resolvable:$true] %s219
      %222 = dma.vmem_to_hbm [thread:$0]  %s220, 128, %s5, [#allocation4]
    $region45: #{tpu_custom_call.1} parent=1 // pred_fallthru
      _
    // Predicated region
    $region46: #{tpu_custom_call.1} parent=1 // pred_check
      _
    $region47: #{tpu_custom_call.1} parent=1 // pred_check_branch
      %224 = sbr.rel (0) target = $region49
    $region48: #{tpu_custom_call.1} parent=1 // pred_region
      %225 = dma.done [#allocation4], 128
    $region49: #{tpu_custom_call.1} parent=1 // pred_fallthru
      _
    %226 = vsyncpa [#allocation3], 1
    %227 = vsyncpa [#allocation4], 1
    %228 = vsyncpa [#allocation5], 1
    %229 = vsyncpa [#allocation8], 1
    %230 = vsyncpa [#allocation11], 1

</llo_original>
